<compile_context>
chip_gen: v6e
topology: v6e:2x2x1
jax: 0.10.0
libtpu: 0.0.40
codegen_flags: <defaults>
</compile_context>

<pallas_src>
import functools

import numpy as np

import jax
import jax.numpy as jnp
from jax.experimental import pallas as pl
from jax.experimental.pallas import tpu as pltpu


def _rmsnorm_kernel(x_ref, w_ref, o_ref, *, eps: float):
    # x_ref / o_ref: (tile_rows, D), w_ref: (1, D).
    x = x_ref[...].astype(jnp.float32)
    w = w_ref[...].astype(jnp.float32)            # broadcasts over rows
    inv = jax.lax.rsqrt(jnp.mean(x * x, axis=-1, keepdims=True) + eps)
    o_ref[...] = (x * inv * w).astype(o_ref.dtype)


def _rmsnorm_folded_kernel(x_ref, w_ref, g_ref, s_ref, o_ref, *,
                           eps: float, d_model: int):
    # x_ref / o_ref: (tile_rows, D_eff) with D_eff = fold * d_model;
    # each 128-lane physical row holds `fold` logical rows of width d_model.
    # g_ref: (D_eff, fold) gather, s_ref: (fold, D_eff) scatter — 0/1 constants
    # built at trace time; the two tiny matmuls run on the otherwise-idle MXU.
    x = x_ref[...].astype(jnp.float32)
    w = w_ref[...].astype(jnp.float32)
    ssq = jnp.dot(x * x, g_ref[...],
                  preferred_element_type=jnp.float32,
                  precision=jax.lax.Precision.HIGHEST)       # (tr, fold)
    inv_seg = jax.lax.rsqrt(ssq * (1.0 / d_model) + eps)
    inv = jnp.dot(inv_seg, s_ref[...],
                  preferred_element_type=jnp.float32,
                  precision=jax.lax.Precision.HIGHEST)       # (tr, D_eff)
    o_ref[...] = (x * inv * w).astype(o_ref.dtype)


def _round_up(v: int, m: int) -> int:
    return -(-v // m) * m


def _vmem_capacity_bytes() -> int:
    try:
        info = pltpu.get_tpu_info()
        cap = getattr(info, "vmem_capacity_bytes", None)
        if cap:
            return int(cap)
    except Exception:
        pass
    return 128 * 1024 * 1024   # conservative default (v5e/v6e class)


def rmsnorm(x: jax.Array, weight: jax.Array, eps: float = 1e-5,
            vmem_budget_bytes: int | None = None) -> jax.Array:
    """RMSNorm over the last axis, matching the PyTorch reference semantics."""
    orig_shape = x.shape
    d_model = orig_shape[-1]
    rows = 1
    for s in orig_shape[:-1]:
        rows *= int(s)
    x2d = x.reshape(rows, d_model)
    itemsize = jnp.dtype(x.dtype).itemsize

    # Generation-aware VMEM sizing (64 MiB/TC on v7x vs 128 MiB on v5e/v6e).
    vmem_cap = _vmem_capacity_bytes()
    if vmem_budget_bytes is None:
        vmem_budget_bytes = int(vmem_cap * 0.4)      # pipeline buffers
    vmem_limit_bytes = int(vmem_cap * 0.75)          # scoped limit, with headroom

    # Lane folding for narrow d_model -> lane-dense (multiple-of-128) slab.
    fold = 128 // d_model if (d_model < 128 and 128 % d_model == 0) else 1
    d_eff = d_model * fold

    if fold > 1:
        pad = (-rows) % fold                         # < fold extra rows only
        if pad:
            x2d = jnp.pad(x2d, ((0, pad), (0, 0)))   # tiny; zeros are harmless
        rows_view = (rows + pad) // fold
        x_slab = x2d.reshape(rows_view, d_eff)
        w_slab = jnp.tile(weight, fold).reshape(1, d_eff)
    else:
        pad = 0
        rows_view = rows
        x_slab = x2d
        w_slab = weight.reshape(1, d_model)

    # Sublane minimum per dtype (f32: 8, bf16: 16, int8/fp8: 32).
    sublane_min = max(8, 32 // itemsize)

    # Row tile from the VMEM budget: double-buffered in + out pipeline buffers,
    # plus headroom for the in-kernel f32 upcast of narrow dtypes.
    per_row = 4 * d_eff * itemsize
    if itemsize < 4:
        per_row += 2 * d_eff * 4
    tr = max(1, vmem_budget_bytes // per_row)
    tr = min(tr, 4096)                                                 # row cap
    tr = min(tr, max(1, (4 * 1024 * 1024) // max(1, d_eff * itemsize)))  # ~4 MiB/block
    tr = max(sublane_min, (tr // sublane_min) * sublane_min)
    if rows_view > 2 * sublane_min:
        # Keep >= 2 grid steps so the "parallel" axis can shard across v7x's
        # 2 TensorCores (a grid of 1 would serialize on one core).
        tr = min(tr, _round_up((rows_view + 1) // 2, sublane_min))
    if tr >= rows_view:
        tr = rows_view            # single block == full array (always legal)
    grid = -(-rows_view // tr)    # ragged last block handled by Pallas masking

    row_spec = pl.BlockSpec((tr, d_eff), lambda i: (i, 0))
    # Constant index_map -> these blocks stay VMEM-resident across all steps.
    w_spec = pl.BlockSpec((1, d_eff), lambda i: (0, 0))

    if fold > 1:
        # Trace-time 0/1 gather/scatter constants for the segmented reduction.
        seg = np.arange(d_eff, dtype=np.int32) // d_model
        gather = (seg[:, None] == np.arange(fold)[None, :]).astype(np.float32)
        scatter = np.ascontiguousarray(gather.T)
        kernel = functools.partial(_rmsnorm_folded_kernel, eps=eps, d_model=d_model)
        in_specs = [
            row_spec,
            w_spec,
            pl.BlockSpec((d_eff, fold), lambda i: (0, 0)),
            pl.BlockSpec((fold, d_eff), lambda i: (0, 0)),
        ]
        args = (x_slab, w_slab, jnp.asarray(gather), jnp.asarray(scatter))
    else:
        kernel = functools.partial(_rmsnorm_kernel, eps=eps)
        in_specs = [row_spec, w_spec]
        args = (x_slab, w_slab)

    cost = pl.CostEstimate(
        flops=4 * rows_view * d_eff,
        transcendentals=rows_view * fold,
        bytes_accessed=2 * rows_view * d_eff * itemsize + d_eff * itemsize,
    )

    out = pl.pallas_call(
        kernel,
        out_shape=jax.ShapeDtypeStruct((rows_view, d_eff), x.dtype),
        grid_spec=pltpu.PrefetchScalarGridSpec(
            num_scalar_prefetch=0,
            grid=(grid,),
            in_specs=in_specs,
            out_specs=pl.BlockSpec((tr, d_eff), lambda i: (i, 0)),
        ),
        compiler_params=pltpu.CompilerParams(
            dimension_semantics=("parallel",),
            vmem_limit_bytes=vmem_limit_bytes,
        ),
        cost_estimate=cost,
    )(*args)

    if fold > 1:
        out = out.reshape(rows_view * fold, d_model)
        if pad:
            out = out[:rows]
    return out.reshape(orig_shape)


def rmsnorm_ref(x, weight, eps=1e-5):
    xf = x.astype(jnp.float32)
    inv = jax.lax.rsqrt(jnp.mean(xf * xf, axis=-1, keepdims=True) + eps)
    return (xf * inv * weight.astype(jnp.float32)).astype(x.dtype)


if __name__ == "__main__":
    key = jax.random.PRNGKey(0)

    # Demo shape matching the module: narrow d_model exercises the lane-fold path.
    batch, seq, d_model = 2, 8, 32
    x = jax.random.normal(key, (batch, seq, d_model), dtype=jnp.float32)
    weight = jnp.ones((d_model,), dtype=jnp.float32)  # nn.Parameter(torch.ones(d_model))

    out = jax.block_until_ready(rmsnorm(x, weight, eps=1e-5))
    ref = rmsnorm_ref(x, weight, eps=1e-5)
    assert out.shape == x.shape and out.dtype == x.dtype
    assert jnp.allclose(out, ref, atol=1e-5, rtol=1e-5), "mismatch vs reference (fold path)"

    # General path (D multiple of 128), odd row count, single full-array block.
    x2 = jax.random.normal(jax.random.PRNGKey(1), (3, 5, 256), dtype=jnp.float32)
    w2 = jax.random.normal(jax.random.PRNGKey(2), (256,), dtype=jnp.float32)
    out2 = jax.block_until_ready(rmsnorm(x2, w2, eps=1e-5))
    ref2 = rmsnorm_ref(x2, w2, eps=1e-5)
    assert out2.shape == x2.shape and out2.dtype == x2.dtype
    assert jnp.allclose(out2, ref2, atol=1e-5, rtol=1e-5), "mismatch vs reference (general path)"

    # General path with >1 grid step and a ragged (masked) last block — the
    # no-pad / no-slice fast path exercised end to end.
    x3 = jax.random.normal(jax.random.PRNGKey(3), (4, 9, 256), dtype=jnp.float32)
    w3 = jax.random.normal(jax.random.PRNGKey(4), (256,), dtype=jnp.float32)
    out3 = jax.block_until_ready(rmsnorm(x3, w3, eps=1e-5))
    ref3 = rmsnorm_ref(x3, w3, eps=1e-5)
    assert out3.shape == x3.shape and out3.dtype == x3.dtype
    assert jnp.allclose(out3, ref3, atol=1e-5, rtol=1e-5), "mismatch vs reference (ragged path)"

    print("KERNEL_OK")
</pallas_src>

<mosaic_0001>
module attributes {stable_mosaic.version = 11 : i64} {
  func.func @_rmsnorm_folded_kernel(%arg0: i32, %arg1: memref<4x128xf32, #tpu.memory_space<vmem>>, %arg2: memref<1x128xf32, #tpu.memory_space<vmem>>, %arg3: memref<128x4xf32, #tpu.memory_space<vmem>>, %arg4: memref<4x128xf32, #tpu.memory_space<vmem>>, %arg5: memref<4x128xf32, #tpu.memory_space<vmem>>) attributes {dimension_semantics = [#tpu.dimension_semantics<parallel>], iteration_bounds = array<i64: 1>, scalar_prefetch = 0 : i64, scratch_operands = 0 : i64, tpu.core_type = #tpu.core_type<tc>, window_params = [{transform_indices = @transform_0, window_bounds = array<i64: 4, 128>}, {pipeline_mode = #tpu.pipeline_mode<synchronous>, transform_indices = @transform_1, window_bounds = array<i64: 1, 128>}, {pipeline_mode = #tpu.pipeline_mode<synchronous>, transform_indices = @transform_2, window_bounds = array<i64: 128, 4>}, {pipeline_mode = #tpu.pipeline_mode<synchronous>, transform_indices = @transform_3, window_bounds = array<i64: 4, 128>}, {transform_indices = @transform_4, window_bounds = array<i64: 4, 128>}]} {
    %c0 = arith.constant 0 : index
    %c0_0 = arith.constant 0 : index
    %0 = vector.load %arg1[%c0, %c0_0] : memref<4x128xf32, #tpu.memory_space<vmem>>, vector<4x128xf32>
    %c0_1 = arith.constant 0 : index
    %c0_2 = arith.constant 0 : index
    %1 = vector.load %arg2[%c0_1, %c0_2] : memref<1x128xf32, #tpu.memory_space<vmem>>, vector<1x128xf32>
    %2 = arith.mulf %0, %0 : vector<4x128xf32>
    %c0_3 = arith.constant 0 : index
    %c0_4 = arith.constant 0 : index
    %3 = vector.load %arg3[%c0_3, %c0_4] : memref<128x4xf32, #tpu.memory_space<vmem>>, vector<128x4xf32>
    %cst = arith.constant dense<0.000000e+00> : vector<4x4xf32>
    %4 = tpu.matmul %2, %3, %cst {dimension_numbers = #tpu.dot_dimension_numbers<[1], [0], [0], [1], [0, 0, 1, 1], [], []>, precision = #tpu.contract_precision<fp32>} : vector<4x128xf32>, vector<128x4xf32>, vector<4x4xf32> -> vector<4x4xf32>
    %cst_5 = arith.constant 3.125000e-02 : f32
    %5 = vector.broadcast %cst_5 : f32 to vector<4x4xf32>
    %6 = arith.mulf %4, %5 : vector<4x4xf32>
    %cst_6 = arith.constant 9.99999974E-6 : f32
    %7 = vector.broadcast %cst_6 : f32 to vector<4x4xf32>
    %8 = arith.addf %6, %7 : vector<4x4xf32>
    %9 = math.rsqrt %8 : vector<4x4xf32>
    %c0_7 = arith.constant 0 : index
    %c0_8 = arith.constant 0 : index
    %10 = vector.load %arg4[%c0_7, %c0_8] : memref<4x128xf32, #tpu.memory_space<vmem>>, vector<4x128xf32>
    %cst_9 = arith.constant dense<0.000000e+00> : vector<4x128xf32>
    %11 = tpu.matmul %9, %10, %cst_9 {dimension_numbers = #tpu.dot_dimension_numbers<[1], [0], [0], [1], [0, 0, 1, 1], [], []>, precision = #tpu.contract_precision<fp32>} : vector<4x4xf32>, vector<4x128xf32>, vector<4x128xf32> -> vector<4x128xf32>
    %12 = arith.mulf %0, %11 : vector<4x128xf32>
    %13 = vector.broadcast %1 : vector<1x128xf32> to vector<4x128xf32>
    %14 = arith.mulf %12, %13 : vector<4x128xf32>
    %c0_10 = arith.constant 0 : index
    %c0_11 = arith.constant 0 : index
    %15 = vector.load %arg5[%c0_10, %c0_11] : memref<4x128xf32, #tpu.memory_space<vmem>>, vector<4x128xf32>
    tpu.vector_store %arg5[%c0_10, %c0_11], %14 {strides = array<i32>} : memref<4x128xf32, #tpu.memory_space<vmem>>, vector<4x128xf32>,
    return
  }
  func.func @transform_0(%arg0: i32) -> (i32, i32) {
    %c0_i32 = arith.constant 0 : i32
    %c0_i32_0 = arith.constant 0 : i32
    return %arg0, %c0_i32 : i32, i32
  }
  func.func @transform_1(%arg0: i32) -> (i32, i32) {
    %c0_i32 = arith.constant 0 : i32
    %c0_i32_0 = arith.constant 0 : i32
    %c0_i32_1 = arith.constant 0 : i32
    return %c0_i32, %c0_i32_0 : i32, i32
  }
  func.func @transform_2(%arg0: i32) -> (i32, i32) {
    %c0_i32 = arith.constant 0 : i32
    %c0_i32_0 = arith.constant 0 : i32
    %c0_i32_1 = arith.constant 0 : i32
    return %c0_i32, %c0_i32_0 : i32, i32
  }
  func.func @transform_3(%arg0: i32) -> (i32, i32) {
    %c0_i32 = arith.constant 0 : i32
    %c0_i32_0 = arith.constant 0 : i32
    %c0_i32_1 = arith.constant 0 : i32
    return %c0_i32, %c0_i32_0 : i32, i32
  }
  func.func @transform_4(%arg0: i32) -> (i32, i32) {
    %c0_i32 = arith.constant 0 : i32
    %c0_i32_0 = arith.constant 0 : i32
    return %arg0, %c0_i32 : i32, i32
  }
}

</mosaic_0001>

<llo_original>
// kernel: tpu_custom_call.1
$region0: #{tpu_custom_call.1}
  #allocation0 [shape = 'u32[]', space=smem, size = 0x4, offset = 0x4, fixed_abs, tag = 'smem constant byte address 0x4 - core index']
  #allocation1 [shape = 'u32[144,128]{1,0:T(1,128)}', space=vmem, size = 0x12000, scoped, tag = 'internal scratch']
  %s0 = inlined_call_operand.vmem [shape: f32[4,128], index: 0, kind: input, shape index: {}]
  %s1 = inlined_call_operand.vmem [shape: f32[1,128], index: 1, kind: input, shape index: {}]
  %s2 = inlined_call_operand.vmem [shape: f32[128,4], index: 2, kind: input, shape index: {}]
  %s3 = inlined_call_operand.vmem [shape: f32[4,128], index: 3, kind: input, shape index: {}]
  %s4 = inlined_call_operand.hbm [shape: f32[4,128], index: 4, kind: output, shape index: {}]
  %s5 = sld [smem:[#allocation0]]
  $region26: #{tpu_custom_call.1} parent=0
    _
  %s7 = ssub.s32 1, %s5
  %s8 = scalar_select 0, %s7, %s5
  $region1: #{tpu_custom_call.1} parent=0
    #allocation2 [shape = 'u8[2048]{0}', space=vmem, size = 0x800, scoped, tag = 'output window, operand 0, single buffered']
    #allocation3 [shape = 's32[1]{0}', space=sflag, size = 0x4, scoped, tag = 'scoped memory for tpu_custom_call.1']
    %9 = vsyncpa [#allocation3], 0
    // Predicated region
    $region2: #{tpu_custom_call.1} parent=1 // pred_check
      _
    $region3: #{tpu_custom_call.1} parent=1 // pred_check_branch
      %11 = sbr.rel (0) target = $region5
    $region4: #{tpu_custom_call.1} parent=1 // pred_region
      _
    $region5: #{tpu_custom_call.1} parent=1 // pred_fallthru
      _
    // Predicated region
    $region6: #{tpu_custom_call.1} parent=1 // pred_check
      _
    $region7: #{tpu_custom_call.1} parent=1 // pred_check_branch
      %13 = sbr.rel (0) target = $region9
    $region8: #{tpu_custom_call.1} parent=1 // pred_region
      _
    $region9: #{tpu_custom_call.1} parent=1 // pred_fallthru
      _
    // Predicated region
    $region10: #{tpu_custom_call.1} parent=1 // pred_check
      _
    $region11: #{tpu_custom_call.1} parent=1 // pred_check_branch
      %15 = sbr.rel (0) target = $region13
    $region12: #{tpu_custom_call.1} parent=1 // pred_region
      _
    $region13: #{tpu_custom_call.1} parent=1 // pred_fallthru
      _
    // Predicated region
    $region14: #{tpu_custom_call.1} parent=1 // pred_check
      _
    $region15: #{tpu_custom_call.1} parent=1 // pred_check_branch
      %17 = sbr.rel (0) target = $region17
    $region16: #{tpu_custom_call.1} parent=1 // pred_region
      _
    $region17: #{tpu_custom_call.1} parent=1 // pred_fallthru
      _
    %v18 = vld [vmem:[%s0] sm:$0xf]
    %v19 = vld [vmem:[%s1] sm:$0x1]
    %v20 = vmul.f32 %v18, %v18
    %v21 = vld [vmem:[%s2] sm:$0xff]
    %v22 = vld [vmem:[%s2 + $0x8] sm:$0xff]
    %v23 = vld [vmem:[%s2 + $0x10] sm:$0xff]
    %v24 = vld [vmem:[%s2 + $0x18] sm:$0xff]
    %v25 = vld [vmem:[%s2 + $0x20] sm:$0xff]
    %v26 = vld [vmem:[%s2 + $0x28] sm:$0xff]
    %v27 = vld [vmem:[%s2 + $0x30] sm:$0xff]
    %v28 = vld [vmem:[%s2 + $0x38] sm:$0xff]
    %v29 = vld [vmem:[%s2 + $0x40] sm:$0xff]
    %v30 = vld [vmem:[%s2 + $0x48] sm:$0xff]
    %v31 = vld [vmem:[%s2 + $0x50] sm:$0xff]
    %v32 = vld [vmem:[%s2 + $0x58] sm:$0xff]
    %v33 = vld [vmem:[%s2 + $0x60] sm:$0xff]
    %v34 = vld [vmem:[%s2 + $0x68] sm:$0xff]
    %v35 = vld [vmem:[%s2 + $0x70] sm:$0xff]
    %v36 = vld [vmem:[%s2 + $0x78] sm:$0xff]
    %37 = vmatprep.subr.mxu0 0.0
    %v38 = vand.u32 %v36, 4294901760
    %39 = vmatpush1.msra.mxu0 %v38
    %40 = vmatprep.subr.mxu0 0.0
    %v41 = vand.u32 %v35, 4294901760
    %42 = vmatpush1.msra.mxu0 %v41
    %43 = vmatprep.subr.mxu0 0.0
    %v44 = vand.u32 %v34, 4294901760
    %45 = vmatpush1.msra.mxu0 %v44
    %46 = vmatprep.subr.mxu0 0.0
    %v47 = vand.u32 %v33, 4294901760
    %48 = vmatpush1.msra.mxu0 %v47
    %49 = vmatprep.subr.mxu0 0.0
    %v50 = vand.u32 %v32, 4294901760
    %51 = vmatpush1.msra.mxu0 %v50
    %52 = vmatprep.subr.mxu0 0.0
    %v53 = vand.u32 %v31, 4294901760
    %54 = vmatpush1.msra.mxu0 %v53
    %55 = vmatprep.subr.mxu0 0.0
    %v56 = vand.u32 %v30, 4294901760
    %57 = vmatpush1.msra.mxu0 %v56
    %58 = vmatprep.subr.mxu0 0.0
    %v59 = vand.u32 %v29, 4294901760
    %60 = vmatpush1.msra.mxu0 %v59
    %61 = vmatprep.subr.mxu0 0.0
    %v62 = vand.u32 %v28, 4294901760
    %63 = vmatpush1.msra.mxu0 %v62
    %64 = vmatprep.subr.mxu0 0.0
    %v65 = vand.u32 %v27, 4294901760
    %66 = vmatpush1.msra.mxu0 %v65
    %67 = vmatprep.subr.mxu0 0.0
    %v68 = vand.u32 %v26, 4294901760
    %69 = vmatpush1.msra.mxu0 %v68
    %70 = vmatprep.subr.mxu0 0.0
    %v71 = vand.u32 %v25, 4294901760
    %72 = vmatpush1.msra.mxu0 %v71
    %73 = vmatprep.subr.mxu0 0.0
    %v74 = vand.u32 %v24, 4294901760
    %75 = vmatpush1.msra.mxu0 %v74
    %76 = vmatprep.subr.mxu0 0.0
    %v77 = vand.u32 %v23, 4294901760
    %78 = vmatpush1.msra.mxu0 %v77
    %79 = vmatprep.subr.mxu0 0.0
    %v80 = vand.u32 %v22, 4294901760
    %81 = vmatpush1.msra.mxu0 %v80
    %82 = vmatprep.subr.mxu0 0.0
    %v83 = vand.u32 %v21, 4294901760
    %84 = vmatpush1.msra.mxu0 %v83
    %85 = vmatprep.subr.mxu0 0.0
    %86 = vmatpush2.msra.mxu0 0.0
    %87 = vmatprep.subr.mxu0 0.0
    %88 = vmatpush2.msra.mxu0 0.0
    %89 = vmatprep.subr.mxu0 0.0
    %90 = vmatpush2.msra.mxu0 0.0
    %91 = vmatprep.subr.mxu0 0.0
    %92 = vmatpush2.msra.mxu0 0.0
    %93 = vmatprep.subr.mxu0 0.0
    %94 = vmatpush2.msra.mxu0 0.0
    %95 = vmatprep.subr.mxu0 0.0
    %96 = vmatpush2.msra.mxu0 0.0
    %97 = vmatprep.subr.mxu0 0.0
    %98 = vmatpush2.msra.mxu0 0.0
    %99 = vmatprep.subr.mxu0 0.0
    %100 = vmatpush2.msra.mxu0 0.0
    %101 = vmatprep.subr.mxu0 0.0
    %102 = vmatpush2.msra.mxu0 0.0
    %103 = vmatprep.subr.mxu0 0.0
    %104 = vmatpush2.msra.mxu0 0.0
    %105 = vmatprep.subr.mxu0 0.0
    %106 = vmatpush2.msra.mxu0 0.0
    %107 = vmatprep.subr.mxu0 0.0
    %108 = vmatpush2.msra.mxu0 0.0
    %109 = vmatprep.subr.mxu0 0.0
    %110 = vmatpush2.msra.mxu0 0.0
    %111 = vmatprep.subr.mxu0 0.0
    %112 = vmatpush2.msra.mxu0 0.0
    %113 = vmatprep.subr.mxu0 0.0
    %114 = vmatpush2.msra.mxu0 0.0
    %115 = vmatprep.subr.mxu0 0.0
    %116 = vmatpush2.msra.mxu0 0.0
    %117 = vmatprep.mubr.f32.mxu0 0.0
    %v118 = vand.u32 %v20, 4294901760
    %v119 = vsub.f32 %v20, %v118
    %v120 = vand.u32 %v119, 4294901760
    %v121 = vsub.f32 %v119, %v120
    %v122 = vand.u32 %v121, 4294901760
    %123 = vmatmul.mubr.f32.gmra.mxu0 %v122
    %v124 = vpop.f32.mrf.mxu0
    %v125 = vadd.f32 0.0, %v124
    %v126 = vpop.f32.mrf.mxu0
    %127 = vdwg.mxu0
    %128 = vmatprep.subr.mxu0 0.0
    %v129 = vand.u32 %v36, 4294901760
    %v130 = vsub.f32 %v36, %v129
    %v131 = vand.u32 %v130, 4294901760
    %v132 = vsub.f32 %v130, %v131
    %v133 = vand.u32 %v132, 4294901760
    %134 = vmatpush1.msra.mxu0 %v133
    %135 = vmatprep.subr.mxu0 0.0
    %v136 = vand.u32 %v35, 4294901760
    %v137 = vsub.f32 %v35, %v136
    %v138 = vand.u32 %v137, 4294901760
    %v139 = vsub.f32 %v137, %v138
    %v140 = vand.u32 %v139, 4294901760
    %141 = vmatpush1.msra.mxu0 %v140
    %142 = vmatprep.subr.mxu0 0.0
    %v143 = vand.u32 %v34, 4294901760
    %v144 = vsub.f32 %v34, %v143
    %v145 = vand.u32 %v144, 4294901760
    %v146 = vsub.f32 %v144, %v145
    %v147 = vand.u32 %v146, 4294901760
    %148 = vmatpush1.msra.mxu0 %v147
    %149 = vmatprep.subr.mxu0 0.0
    %v150 = vand.u32 %v33, 4294901760
    %v151 = vsub.f32 %v33, %v150
    %v152 = vand.u32 %v151, 4294901760
    %v153 = vsub.f32 %v151, %v152
    %v154 = vand.u32 %v153, 4294901760
    %155 = vmatpush1.msra.mxu0 %v154
    %156 = vmatprep.subr.mxu0 0.0
    %v157 = vand.u32 %v32, 4294901760
    %v158 = vsub.f32 %v32, %v157
    %v159 = vand.u32 %v158, 4294901760
    %v160 = vsub.f32 %v158, %v159
    %v161 = vand.u32 %v160, 4294901760
    %162 = vmatpush1.msra.mxu0 %v161
    %163 = vmatprep.subr.mxu0 0.0
    %v164 = vand.u32 %v31, 4294901760
    %v165 = vsub.f32 %v31, %v164
    %v166 = vand.u32 %v165, 4294901760
    %v167 = vsub.f32 %v165, %v166
    %v168 = vand.u32 %v167, 4294901760
    %169 = vmatpush1.msra.mxu0 %v168
    %170 = vmatprep.subr.mxu0 0.0
    %v171 = vand.u32 %v30, 4294901760
    %v172 = vsub.f32 %v30, %v171
    %v173 = vand.u32 %v172, 4294901760
    %v174 = vsub.f32 %v172, %v173
    %v175 = vand.u32 %v174, 4294901760
    %176 = vmatpush1.msra.mxu0 %v175
    %177 = vmatprep.subr.mxu0 0.0
    %v178 = vand.u32 %v29, 4294901760
    %v179 = vsub.f32 %v29, %v178
    %v180 = vand.u32 %v179, 4294901760
    %v181 = vsub.f32 %v179, %v180
    %v182 = vand.u32 %v181, 4294901760
    %183 = vmatpush1.msra.mxu0 %v182
    %184 = vmatprep.subr.mxu0 0.0
    %v185 = vand.u32 %v28, 4294901760
    %v186 = vsub.f32 %v28, %v185
    %v187 = vand.u32 %v186, 4294901760
    %v188 = vsub.f32 %v186, %v187
    %v189 = vand.u32 %v188, 4294901760
    %190 = vmatpush1.msra.mxu0 %v189
    %191 = vmatprep.subr.mxu0 0.0
    %v192 = vand.u32 %v27, 4294901760
    %v193 = vsub.f32 %v27, %v192
    %v194 = vand.u32 %v193, 4294901760
    %v195 = vsub.f32 %v193, %v194
    %v196 = vand.u32 %v195, 4294901760
    %197 = vmatpush1.msra.mxu0 %v196
    %198 = vmatprep.subr.mxu0 0.0
    %v199 = vand.u32 %v26, 4294901760
    %v200 = vsub.f32 %v26, %v199
    %v201 = vand.u32 %v200, 4294901760
    %v202 = vsub.f32 %v200, %v201
    %v203 = vand.u32 %v202, 4294901760
    %204 = vmatpush1.msra.mxu0 %v203
    %205 = vmatprep.subr.mxu0 0.0
    %v206 = vand.u32 %v25, 4294901760
    %v207 = vsub.f32 %v25, %v206
    %v208 = vand.u32 %v207, 4294901760
    %v209 = vsub.f32 %v207, %v208
    %v210 = vand.u32 %v209, 4294901760
    %211 = vmatpush1.msra.mxu0 %v210
    %212 = vmatprep.subr.mxu0 0.0
    %v213 = vand.u32 %v24, 4294901760
    %v214 = vsub.f32 %v24, %v213
    %v215 = vand.u32 %v214, 4294901760
    %v216 = vsub.f32 %v214, %v215
    %v217 = vand.u32 %v216, 4294901760
    %218 = vmatpush1.msra.mxu0 %v217
    %219 = vmatprep.subr.mxu0 0.0
    %v220 = vand.u32 %v23, 4294901760
    %v221 = vsub.f32 %v23, %v220
    %v222 = vand.u32 %v221, 4294901760
    %v223 = vsub.f32 %v221, %v222
    %v224 = vand.u32 %v223, 4294901760
    %225 = vmatpush1.msra.mxu0 %v224
    %226 = vmatprep.subr.mxu0 0.0
    %v227 = vand.u32 %v22, 4294901760
    %v228 = vsub.f32 %v22, %v227
    %v229 = vand.u32 %v228, 4294901760
    %v230 = vsub.f32 %v228, %v229
    %v231 = vand.u32 %v230, 4294901760
    %232 = vmatpush1.msra.mxu0 %v231
    %233 = vmatprep.subr.mxu0 0.0
    %v234 = vand.u32 %v21, 4294901760
    %v235 = vsub.f32 %v21, %v234
    %v236 = vand.u32 %v235, 4294901760
    %v237 = vsub.f32 %v235, %v236
    %v238 = vand.u32 %v237, 4294901760
    %239 = vmatpush1.msra.mxu0 %v238
    %240 = vmatprep.subr.mxu0 0.0
    %241 = vmatpush2.msra.mxu0 0.0
    %242 = vmatprep.subr.mxu0 0.0
    %243 = vmatpush2.msra.mxu0 0.0
    %244 = vmatprep.subr.mxu0 0.0
    %245 = vmatpush2.msra.mxu0 0.0
    %246 = vmatprep.subr.mxu0 0.0
    %247 = vmatpush2.msra.mxu0 0.0
    %248 = vmatprep.subr.mxu0 0.0
    %249 = vmatpush2.msra.mxu0 0.0
    %250 = vmatprep.subr.mxu0 0.0
    %251 = vmatpush2.msra.mxu0 0.0
    %252 = vmatprep.subr.mxu0 0.0
    %253 = vmatpush2.msra.mxu0 0.0
    %254 = vmatprep.subr.mxu0 0.0
    %255 = vmatpush2.msra.mxu0 0.0
    %256 = vmatprep.subr.mxu0 0.0
    %257 = vmatpush2.msra.mxu0 0.0
    %258 = vmatprep.subr.mxu0 0.0
    %259 = vmatpush2.msra.mxu0 0.0
    %260 = vmatprep.subr.mxu0 0.0
    %261 = vmatpush2.msra.mxu0 0.0
    %262 = vmatprep.subr.mxu0 0.0
    %263 = vmatpush2.msra.mxu0 0.0
    %264 = vmatprep.subr.mxu0 0.0
    %265 = vmatpush2.msra.mxu0 0.0
    %266 = vmatprep.subr.mxu0 0.0
    %267 = vmatpush2.msra.mxu0 0.0
    %268 = vmatprep.subr.mxu0 0.0
    %269 = vmatpush2.msra.mxu0 0.0
    %270 = vmatprep.subr.mxu0 0.0
    %271 = vmatpush2.msra.mxu0 0.0
    %272 = vmatprep.mubr.f32.mxu0 0.0
    %v273 = vand.u32 %v20, 4294901760
    %274 = vmatmul.mubr.f32.gmra.mxu0 %v273
    %v275 = vpop.f32.mrf.mxu0
    %v276 = vadd.f32 %v125, %v275
    %v277 = vpop.f32.mrf.mxu0
    %278 = vdwg.mxu0
    %279 = vmatprep.subr.mxu0 0.0
    %v280 = vand.u32 %v36, 4294901760
    %v281 = vsub.f32 %v36, %v280
    %282 = vmatpush1.msra.mxu0 %v281
    %283 = vmatprep.subr.mxu0 0.0
    %v284 = vand.u32 %v35, 4294901760
    %v285 = vsub.f32 %v35, %v284
    %286 = vmatpush1.msra.mxu0 %v285
    %287 = vmatprep.subr.mxu0 0.0
    %v288 = vand.u32 %v34, 4294901760
    %v289 = vsub.f32 %v34, %v288
    %290 = vmatpush1.msra.mxu0 %v289
    %291 = vmatprep.subr.mxu0 0.0
    %v292 = vand.u32 %v33, 4294901760
    %v293 = vsub.f32 %v33, %v292
    %294 = vmatpush1.msra.mxu0 %v293
    %295 = vmatprep.subr.mxu0 0.0
    %v296 = vand.u32 %v32, 4294901760
    %v297 = vsub.f32 %v32, %v296
    %298 = vmatpush1.msra.mxu0 %v297
    %299 = vmatprep.subr.mxu0 0.0
    %v300 = vand.u32 %v31, 4294901760
    %v301 = vsub.f32 %v31, %v300
    %302 = vmatpush1.msra.mxu0 %v301
    %303 = vmatprep.subr.mxu0 0.0
    %v304 = vand.u32 %v30, 4294901760
    %v305 = vsub.f32 %v30, %v304
    %306 = vmatpush1.msra.mxu0 %v305
    %307 = vmatprep.subr.mxu0 0.0
    %v308 = vand.u32 %v29, 4294901760
    %v309 = vsub.f32 %v29, %v308
    %310 = vmatpush1.msra.mxu0 %v309
    %311 = vmatprep.subr.mxu0 0.0
    %v312 = vand.u32 %v28, 4294901760
    %v313 = vsub.f32 %v28, %v312
    %314 = vmatpush1.msra.mxu0 %v313
    %315 = vmatprep.subr.mxu0 0.0
    %v316 = vand.u32 %v27, 4294901760
    %v317 = vsub.f32 %v27, %v316
    %318 = vmatpush1.msra.mxu0 %v317
    %319 = vmatprep.subr.mxu0 0.0
    %v320 = vand.u32 %v26, 4294901760
    %v321 = vsub.f32 %v26, %v320
    %322 = vmatpush1.msra.mxu0 %v321
    %323 = vmatprep.subr.mxu0 0.0
    %v324 = vand.u32 %v25, 4294901760
    %v325 = vsub.f32 %v25, %v324
    %326 = vmatpush1.msra.mxu0 %v325
    %327 = vmatprep.subr.mxu0 0.0
    %v328 = vand.u32 %v24, 4294901760
    %v329 = vsub.f32 %v24, %v328
    %330 = vmatpush1.msra.mxu0 %v329
    %331 = vmatprep.subr.mxu0 0.0
    %v332 = vand.u32 %v23, 4294901760
    %v333 = vsub.f32 %v23, %v332
    %334 = vmatpush1.msra.mxu0 %v333
    %335 = vmatprep.subr.mxu0 0.0
    %v336 = vand.u32 %v22, 4294901760
    %v337 = vsub.f32 %v22, %v336
    %338 = vmatpush1.msra.mxu0 %v337
    %339 = vmatprep.subr.mxu0 0.0
    %v340 = vand.u32 %v21, 4294901760
    %v341 = vsub.f32 %v21, %v340
    %342 = vmatpush1.msra.mxu0 %v341
    %343 = vmatprep.subr.mxu0 0.0
    %344 = vmatpush2.msra.mxu0 0.0
    %345 = vmatprep.subr.mxu0 0.0
    %346 = vmatpush2.msra.mxu0 0.0
    %347 = vmatprep.subr.mxu0 0.0
    %348 = vmatpush2.msra.mxu0 0.0
    %349 = vmatprep.subr.mxu0 0.0
    %350 = vmatpush2.msra.mxu0 0.0
    %351 = vmatprep.subr.mxu0 0.0
    %352 = vmatpush2.msra.mxu0 0.0
    %353 = vmatprep.subr.mxu0 0.0
    %354 = vmatpush2.msra.mxu0 0.0
    %355 = vmatprep.subr.mxu0 0.0
    %356 = vmatpush2.msra.mxu0 0.0
    %357 = vmatprep.subr.mxu0 0.0
    %358 = vmatpush2.msra.mxu0 0.0
    %359 = vmatprep.subr.mxu0 0.0
    %360 = vmatpush2.msra.mxu0 0.0
    %361 = vmatprep.subr.mxu0 0.0
    %362 = vmatpush2.msra.mxu0 0.0
    %363 = vmatprep.subr.mxu0 0.0
    %364 = vmatpush2.msra.mxu0 0.0
    %365 = vmatprep.subr.mxu0 0.0
    %366 = vmatpush2.msra.mxu0 0.0
    %367 = vmatprep.subr.mxu0 0.0
    %368 = vmatpush2.msra.mxu0 0.0
    %369 = vmatprep.subr.mxu0 0.0
    %370 = vmatpush2.msra.mxu0 0.0
    %371 = vmatprep.subr.mxu0 0.0
    %372 = vmatpush2.msra.mxu0 0.0
    %373 = vmatprep.subr.mxu0 0.0
    %374 = vmatpush2.msra.mxu0 0.0
    %375 = vmatprep.mubr.f32.mxu0 0.0
    %v376 = vand.u32 %v20, 4294901760
    %v377 = vsub.f32 %v20, %v376
    %378 = vmatmul.mubr.f32.gmra.mxu0 %v377
    %v379 = vpop.f32.mrf.mxu0
    %v380 = vadd.f32 %v276, %v379
    %v381 = vpop.f32.mrf.mxu0
    %382 = vdwg.mxu0
    %383 = vmatprep.subr.mxu0 0.0
    %v384 = vand.u32 %v36, 4294901760
    %385 = vmatpush1.msra.mxu0 %v384
    %386 = vmatprep.subr.mxu0 0.0
    %v387 = vand.u32 %v35, 4294901760
    %388 = vmatpush1.msra.mxu0 %v387
    %389 = vmatprep.subr.mxu0 0.0
    %v390 = vand.u32 %v34, 4294901760
    %391 = vmatpush1.msra.mxu0 %v390
    %392 = vmatprep.subr.mxu0 0.0
    %v393 = vand.u32 %v33, 4294901760
    %394 = vmatpush1.msra.mxu0 %v393
    %395 = vmatprep.subr.mxu0 0.0
    %v396 = vand.u32 %v32, 4294901760
    %397 = vmatpush1.msra.mxu0 %v396
    %398 = vmatprep.subr.mxu0 0.0
    %v399 = vand.u32 %v31, 4294901760
    %400 = vmatpush1.msra.mxu0 %v399
    %401 = vmatprep.subr.mxu0 0.0
    %v402 = vand.u32 %v30, 4294901760
    %403 = vmatpush1.msra.mxu0 %v402
    %404 = vmatprep.subr.mxu0 0.0
    %v405 = vand.u32 %v29, 4294901760
    %406 = vmatpush1.msra.mxu0 %v405
    %407 = vmatprep.subr.mxu0 0.0
    %v408 = vand.u32 %v28, 4294901760
    %409 = vmatpush1.msra.mxu0 %v408
    %410 = vmatprep.subr.mxu0 0.0
    %v411 = vand.u32 %v27, 4294901760
    %412 = vmatpush1.msra.mxu0 %v411
    %413 = vmatprep.subr.mxu0 0.0
    %v414 = vand.u32 %v26, 4294901760
    %415 = vmatpush1.msra.mxu0 %v414
    %416 = vmatprep.subr.mxu0 0.0
    %v417 = vand.u32 %v25, 4294901760
    %418 = vmatpush1.msra.mxu0 %v417
    %419 = vmatprep.subr.mxu0 0.0
    %v420 = vand.u32 %v24, 4294901760
    %421 = vmatpush1.msra.mxu0 %v420
    %422 = vmatprep.subr.mxu0 0.0
    %v423 = vand.u32 %v23, 4294901760
    %424 = vmatpush1.msra.mxu0 %v423
    %425 = vmatprep.subr.mxu0 0.0
    %v426 = vand.u32 %v22, 4294901760
    %427 = vmatpush1.msra.mxu0 %v426
    %428 = vmatprep.subr.mxu0 0.0
    %v429 = vand.u32 %v21, 4294901760
    %430 = vmatpush1.msra.mxu0 %v429
    %431 = vmatprep.subr.mxu0 0.0
    %432 = vmatpush2.msra.mxu0 0.0
    %433 = vmatprep.subr.mxu0 0.0
    %434 = vmatpush2.msra.mxu0 0.0
    %435 = vmatprep.subr.mxu0 0.0
    %436 = vmatpush2.msra.mxu0 0.0
    %437 = vmatprep.subr.mxu0 0.0
    %438 = vmatpush2.msra.mxu0 0.0
    %439 = vmatprep.subr.mxu0 0.0
    %440 = vmatpush2.msra.mxu0 0.0
    %441 = vmatprep.subr.mxu0 0.0
    %442 = vmatpush2.msra.mxu0 0.0
    %443 = vmatprep.subr.mxu0 0.0
    %444 = vmatpush2.msra.mxu0 0.0
    %445 = vmatprep.subr.mxu0 0.0
    %446 = vmatpush2.msra.mxu0 0.0
    %447 = vmatprep.subr.mxu0 0.0
    %448 = vmatpush2.msra.mxu0 0.0
    %449 = vmatprep.subr.mxu0 0.0
    %450 = vmatpush2.msra.mxu0 0.0
    %451 = vmatprep.subr.mxu0 0.0
    %452 = vmatpush2.msra.mxu0 0.0
    %453 = vmatprep.subr.mxu0 0.0
    %454 = vmatpush2.msra.mxu0 0.0
    %455 = vmatprep.subr.mxu0 0.0
    %456 = vmatpush2.msra.mxu0 0.0
    %457 = vmatprep.subr.mxu0 0.0
    %458 = vmatpush2.msra.mxu0 0.0
    %459 = vmatprep.subr.mxu0 0.0
    %460 = vmatpush2.msra.mxu0 0.0
    %461 = vmatprep.subr.mxu0 0.0
    %462 = vmatpush2.msra.mxu0 0.0
    %463 = vmatprep.mubr.f32.mxu0 0.0
    %v464 = vand.u32 %v20, 4294901760
    %v465 = vsub.f32 %v20, %v464
    %v466 = vand.u32 %v465, 4294901760
    %467 = vmatmul.mubr.f32.gmra.mxu0 %v466
    %v468 = vpop.f32.mrf.mxu0
    %v469 = vadd.f32 %v380, %v468
    %v470 = vpop.f32.mrf.mxu0
    %471 = vdwg.mxu0
    %472 = vmatprep.subr.mxu0 0.0
    %v473 = vand.u32 %v36, 4294901760
    %v474 = vsub.f32 %v36, %v473
    %v475 = vand.u32 %v474, 4294901760
    %476 = vmatpush1.msra.mxu0 %v475
    %477 = vmatprep.subr.mxu0 0.0
    %v478 = vand.u32 %v35, 4294901760
    %v479 = vsub.f32 %v35, %v478
    %v480 = vand.u32 %v479, 4294901760
    %481 = vmatpush1.msra.mxu0 %v480
    %482 = vmatprep.subr.mxu0 0.0
    %v483 = vand.u32 %v34, 4294901760
    %v484 = vsub.f32 %v34, %v483
    %v485 = vand.u32 %v484, 4294901760
    %486 = vmatpush1.msra.mxu0 %v485
    %487 = vmatprep.subr.mxu0 0.0
    %v488 = vand.u32 %v33, 4294901760
    %v489 = vsub.f32 %v33, %v488
    %v490 = vand.u32 %v489, 4294901760
    %491 = vmatpush1.msra.mxu0 %v490
    %492 = vmatprep.subr.mxu0 0.0
    %v493 = vand.u32 %v32, 4294901760
    %v494 = vsub.f32 %v32, %v493
    %v495 = vand.u32 %v494, 4294901760
    %496 = vmatpush1.msra.mxu0 %v495
    %497 = vmatprep.subr.mxu0 0.0
    %v498 = vand.u32 %v31, 4294901760
    %v499 = vsub.f32 %v31, %v498
    %v500 = vand.u32 %v499, 4294901760
    %501 = vmatpush1.msra.mxu0 %v500
    %502 = vmatprep.subr.mxu0 0.0
    %v503 = vand.u32 %v30, 4294901760
    %v504 = vsub.f32 %v30, %v503
    %v505 = vand.u32 %v504, 4294901760
    %506 = vmatpush1.msra.mxu0 %v505
    %507 = vmatprep.subr.mxu0 0.0
    %v508 = vand.u32 %v29, 4294901760
    %v509 = vsub.f32 %v29, %v508
    %v510 = vand.u32 %v509, 4294901760
    %511 = vmatpush1.msra.mxu0 %v510
    %512 = vmatprep.subr.mxu0 0.0
    %v513 = vand.u32 %v28, 4294901760
    %v514 = vsub.f32 %v28, %v513
    %v515 = vand.u32 %v514, 4294901760
    %516 = vmatpush1.msra.mxu0 %v515
    %517 = vmatprep.subr.mxu0 0.0
    %v518 = vand.u32 %v27, 4294901760
    %v519 = vsub.f32 %v27, %v518
    %v520 = vand.u32 %v519, 4294901760
    %521 = vmatpush1.msra.mxu0 %v520
    %522 = vmatprep.subr.mxu0 0.0
    %v523 = vand.u32 %v26, 4294901760
    %v524 = vsub.f32 %v26, %v523
    %v525 = vand.u32 %v524, 4294901760
    %526 = vmatpush1.msra.mxu0 %v525
    %527 = vmatprep.subr.mxu0 0.0
    %v528 = vand.u32 %v25, 4294901760
    %v529 = vsub.f32 %v25, %v528
    %v530 = vand.u32 %v529, 4294901760
    %531 = vmatpush1.msra.mxu0 %v530
    %532 = vmatprep.subr.mxu0 0.0
    %v533 = vand.u32 %v24, 4294901760
    %v534 = vsub.f32 %v24, %v533
    %v535 = vand.u32 %v534, 4294901760
    %536 = vmatpush1.msra.mxu0 %v535
    %537 = vmatprep.subr.mxu0 0.0
    %v538 = vand.u32 %v23, 4294901760
    %v539 = vsub.f32 %v23, %v538
    %v540 = vand.u32 %v539, 4294901760
    %541 = vmatpush1.msra.mxu0 %v540
    %542 = vmatprep.subr.mxu0 0.0
    %v543 = vand.u32 %v22, 4294901760
    %v544 = vsub.f32 %v22, %v543
    %v545 = vand.u32 %v544, 4294901760
    %546 = vmatpush1.msra.mxu0 %v545
    %547 = vmatprep.subr.mxu0 0.0
    %v548 = vand.u32 %v21, 4294901760
    %v549 = vsub.f32 %v21, %v548
    %v550 = vand.u32 %v549, 4294901760
    %551 = vmatpush1.msra.mxu0 %v550
    %552 = vmatprep.subr.mxu0 0.0
    %553 = vmatpush2.msra.mxu0 0.0
    %554 = vmatprep.subr.mxu0 0.0
    %555 = vmatpush2.msra.mxu0 0.0
    %556 = vmatprep.subr.mxu0 0.0
    %557 = vmatpush2.msra.mxu0 0.0
    %558 = vmatprep.subr.mxu0 0.0
    %559 = vmatpush2.msra.mxu0 0.0
    %560 = vmatprep.subr.mxu0 0.0
    %561 = vmatpush2.msra.mxu0 0.0
    %562 = vmatprep.subr.mxu0 0.0
    %563 = vmatpush2.msra.mxu0 0.0
    %564 = vmatprep.subr.mxu0 0.0
    %565 = vmatpush2.msra.mxu0 0.0
    %566 = vmatprep.subr.mxu0 0.0
    %567 = vmatpush2.msra.mxu0 0.0
    %568 = vmatprep.subr.mxu0 0.0
    %569 = vmatpush2.msra.mxu0 0.0
    %570 = vmatprep.subr.mxu0 0.0
    %571 = vmatpush2.msra.mxu0 0.0
    %572 = vmatprep.subr.mxu0 0.0
    %573 = vmatpush2.msra.mxu0 0.0
    %574 = vmatprep.subr.mxu0 0.0
    %575 = vmatpush2.msra.mxu0 0.0
    %576 = vmatprep.subr.mxu0 0.0
    %577 = vmatpush2.msra.mxu0 0.0
    %578 = vmatprep.subr.mxu0 0.0
    %579 = vmatpush2.msra.mxu0 0.0
    %580 = vmatprep.subr.mxu0 0.0
    %581 = vmatpush2.msra.mxu0 0.0
    %582 = vmatprep.subr.mxu0 0.0
    %583 = vmatpush2.msra.mxu0 0.0
    %584 = vmatprep.mubr.f32.mxu0 0.0
    %v585 = vand.u32 %v20, 4294901760
    %586 = vmatmul.mubr.f32.gmra.mxu0 %v585
    %v587 = vpop.f32.mrf.mxu0
    %v588 = vadd.f32 %v469, %v587
    %v589 = vpop.f32.mrf.mxu0
    %590 = vdwg.mxu0
    %591 = vmatprep.subr.mxu0 0.0
    %v592 = vand.u32 %v36, 4294901760
    %593 = vmatpush1.msra.mxu0 %v592
    %594 = vmatprep.subr.mxu0 0.0
    %v595 = vand.u32 %v35, 4294901760
    %596 = vmatpush1.msra.mxu0 %v595
    %597 = vmatprep.subr.mxu0 0.0
    %v598 = vand.u32 %v34, 4294901760
    %599 = vmatpush1.msra.mxu0 %v598
    %600 = vmatprep.subr.mxu0 0.0
    %v601 = vand.u32 %v33, 4294901760
    %602 = vmatpush1.msra.mxu0 %v601
    %603 = vmatprep.subr.mxu0 0.0
    %v604 = vand.u32 %v32, 4294901760
    %605 = vmatpush1.msra.mxu0 %v604
    %606 = vmatprep.subr.mxu0 0.0
    %v607 = vand.u32 %v31, 4294901760
    %608 = vmatpush1.msra.mxu0 %v607
    %609 = vmatprep.subr.mxu0 0.0
    %v610 = vand.u32 %v30, 4294901760
    %611 = vmatpush1.msra.mxu0 %v610
    %612 = vmatprep.subr.mxu0 0.0
    %v613 = vand.u32 %v29, 4294901760
    %614 = vmatpush1.msra.mxu0 %v613
    %615 = vmatprep.subr.mxu0 0.0
    %v616 = vand.u32 %v28, 4294901760
    %617 = vmatpush1.msra.mxu0 %v616
    %618 = vmatprep.subr.mxu0 0.0
    %v619 = vand.u32 %v27, 4294901760
    %620 = vmatpush1.msra.mxu0 %v619
    %621 = vmatprep.subr.mxu0 0.0
    %v622 = vand.u32 %v26, 4294901760
    %623 = vmatpush1.msra.mxu0 %v622
    %624 = vmatprep.subr.mxu0 0.0
    %v625 = vand.u32 %v25, 4294901760
    %626 = vmatpush1.msra.mxu0 %v625
    %627 = vmatprep.subr.mxu0 0.0
    %v628 = vand.u32 %v24, 4294901760
    %629 = vmatpush1.msra.mxu0 %v628
    %630 = vmatprep.subr.mxu0 0.0
    %v631 = vand.u32 %v23, 4294901760
    %632 = vmatpush1.msra.mxu0 %v631
    %633 = vmatprep.subr.mxu0 0.0
    %v634 = vand.u32 %v22, 4294901760
    %635 = vmatpush1.msra.mxu0 %v634
    %636 = vmatprep.subr.mxu0 0.0
    %v637 = vand.u32 %v21, 4294901760
    %638 = vmatpush1.msra.mxu0 %v637
    %639 = vmatprep.subr.mxu0 0.0
    %640 = vmatpush2.msra.mxu0 0.0
    %641 = vmatprep.subr.mxu0 0.0
    %642 = vmatpush2.msra.mxu0 0.0
    %643 = vmatprep.subr.mxu0 0.0
    %644 = vmatpush2.msra.mxu0 0.0
    %645 = vmatprep.subr.mxu0 0.0
    %646 = vmatpush2.msra.mxu0 0.0
    %647 = vmatprep.subr.mxu0 0.0
    %648 = vmatpush2.msra.mxu0 0.0
    %649 = vmatprep.subr.mxu0 0.0
    %650 = vmatpush2.msra.mxu0 0.0
    %651 = vmatprep.subr.mxu0 0.0
    %652 = vmatpush2.msra.mxu0 0.0
    %653 = vmatprep.subr.mxu0 0.0
    %654 = vmatpush2.msra.mxu0 0.0
    %655 = vmatprep.subr.mxu0 0.0
    %656 = vmatpush2.msra.mxu0 0.0
    %657 = vmatprep.subr.mxu0 0.0
    %658 = vmatpush2.msra.mxu0 0.0
    %659 = vmatprep.subr.mxu0 0.0
    %660 = vmatpush2.msra.mxu0 0.0
    %661 = vmatprep.subr.mxu0 0.0
    %662 = vmatpush2.msra.mxu0 0.0
    %663 = vmatprep.subr.mxu0 0.0
    %664 = vmatpush2.msra.mxu0 0.0
    %665 = vmatprep.subr.mxu0 0.0
    %666 = vmatpush2.msra.mxu0 0.0
    %667 = vmatprep.subr.mxu0 0.0
    %668 = vmatpush2.msra.mxu0 0.0
    %669 = vmatprep.subr.mxu0 0.0
    %670 = vmatpush2.msra.mxu0 0.0
    %671 = vmatprep.mubr.f32.mxu0 0.0
    %v672 = vand.u32 %v20, 4294901760
    %673 = vmatmul.mubr.f32.gmra.mxu0 %v672
    %v674 = vpop.f32.mrf.mxu0
    %v675 = vadd.f32 %v588, %v674
    %v676 = vpop.f32.mrf.mxu0
    %677 = vdwg.mxu0
    %v678 = vmul.f32 %v675, 0.03125
    %v679 = vadd.f32 %v678, 1e-05
    %v680 = vrsqrt.pop %v679
    %v681 = vld [vmem:[%s3] sm:$0xf]
    %vm682 = vcmask 31744
    %v684 = vsel %vm682, %v680, 0
    %vm686 = vcmask 1043456
    %v688 = vsel %vm686, %v681, 0
    %690 = vmatprep.subr.mxu0 0.0
    %691 = vmatpush1.msra.mxu0 0.0
    %692 = vmatprep.subr.mxu0 0.0
    %693 = vmatpush1.msra.mxu0 0.0
    %694 = vmatprep.subr.mxu0 0.0
    %695 = vmatpush1.msra.mxu0 0.0
    %696 = vmatprep.subr.mxu0 0.0
    %697 = vmatpush1.msra.mxu0 0.0
    %698 = vmatprep.subr.mxu0 0.0
    %699 = vmatpush1.msra.mxu0 0.0
    %700 = vmatprep.subr.mxu0 0.0
    %701 = vmatpush1.msra.mxu0 0.0
    %702 = vmatprep.subr.mxu0 0.0
    %703 = vmatpush1.msra.mxu0 0.0
    %704 = vmatprep.subr.mxu0 0.0
    %705 = vmatpush1.msra.mxu0 0.0
    %706 = vmatprep.subr.mxu0 0.0
    %707 = vmatpush1.msra.mxu0 0.0
    %708 = vmatprep.subr.mxu0 0.0
    %709 = vmatpush1.msra.mxu0 0.0
    %710 = vmatprep.subr.mxu0 0.0
    %711 = vmatpush1.msra.mxu0 0.0
    %712 = vmatprep.subr.mxu0 0.0
    %713 = vmatpush1.msra.mxu0 0.0
    %714 = vmatprep.subr.mxu0 0.0
    %715 = vmatpush1.msra.mxu0 0.0
    %716 = vmatprep.subr.mxu0 0.0
    %717 = vmatpush1.msra.mxu0 0.0
    %718 = vmatprep.subr.mxu0 0.0
    %719 = vmatpush1.msra.mxu0 0.0
    %720 = vmatprep.subr.mxu0 0.0
    %v721 = vand.u32 %v688, 4294901760
    %722 = vmatpush1.msra.mxu0 %v721
    %723 = vmatprep.subr.mxu0 0.0
    %724 = vmatpush2.msra.mxu0 0.0
    %725 = vmatprep.subr.mxu0 0.0
    %726 = vmatpush2.msra.mxu0 0.0
    %727 = vmatprep.subr.mxu0 0.0
    %728 = vmatpush2.msra.mxu0 0.0
    %729 = vmatprep.subr.mxu0 0.0
    %730 = vmatpush2.msra.mxu0 0.0
    %731 = vmatprep.subr.mxu0 0.0
    %732 = vmatpush2.msra.mxu0 0.0
    %733 = vmatprep.subr.mxu0 0.0
    %734 = vmatpush2.msra.mxu0 0.0
    %735 = vmatprep.subr.mxu0 0.0
    %736 = vmatpush2.msra.mxu0 0.0
    %737 = vmatprep.subr.mxu0 0.0
    %738 = vmatpush2.msra.mxu0 0.0
    %739 = vmatprep.subr.mxu0 0.0
    %740 = vmatpush2.msra.mxu0 0.0
    %741 = vmatprep.subr.mxu0 0.0
    %742 = vmatpush2.msra.mxu0 0.0
    %743 = vmatprep.subr.mxu0 0.0
    %744 = vmatpush2.msra.mxu0 0.0
    %745 = vmatprep.subr.mxu0 0.0
    %746 = vmatpush2.msra.mxu0 0.0
    %747 = vmatprep.subr.mxu0 0.0
    %748 = vmatpush2.msra.mxu0 0.0
    %749 = vmatprep.subr.mxu0 0.0
    %750 = vmatpush2.msra.mxu0 0.0
    %751 = vmatprep.subr.mxu0 0.0
    %752 = vmatpush2.msra.mxu0 0.0
    %753 = vmatprep.subr.mxu0 0.0
    %754 = vmatpush2.msra.mxu0 0.0
    %755 = vmatprep.mubr.f32.mxu0 0.0
    %v756 = vand.u32 %v684, 4294901760
    %v757 = vsub.f32 %v684, %v756
    %v758 = vand.u32 %v757, 4294901760
    %v759 = vsub.f32 %v757, %v758
    %v760 = vand.u32 %v759, 4294901760
    %761 = vmatmul.mubr.f32.gmra.mxu0 %v760
    %v762 = vpop.f32.mrf.mxu0
    %v763 = vadd.f32 0.0, %v762
    %v764 = vpop.f32.mrf.mxu0
    %765 = vdwg.mxu0
    %766 = vmatprep.subr.mxu0 0.0
    %767 = vmatpush1.msra.mxu0 0.0
    %768 = vmatprep.subr.mxu0 0.0
    %769 = vmatpush1.msra.mxu0 0.0
    %770 = vmatprep.subr.mxu0 0.0
    %771 = vmatpush1.msra.mxu0 0.0
    %772 = vmatprep.subr.mxu0 0.0
    %773 = vmatpush1.msra.mxu0 0.0
    %774 = vmatprep.subr.mxu0 0.0
    %775 = vmatpush1.msra.mxu0 0.0
    %776 = vmatprep.subr.mxu0 0.0
    %777 = vmatpush1.msra.mxu0 0.0
    %778 = vmatprep.subr.mxu0 0.0
    %779 = vmatpush1.msra.mxu0 0.0
    %780 = vmatprep.subr.mxu0 0.0
    %781 = vmatpush1.msra.mxu0 0.0
    %782 = vmatprep.subr.mxu0 0.0
    %783 = vmatpush1.msra.mxu0 0.0
    %784 = vmatprep.subr.mxu0 0.0
    %785 = vmatpush1.msra.mxu0 0.0
    %786 = vmatprep.subr.mxu0 0.0
    %787 = vmatpush1.msra.mxu0 0.0
    %788 = vmatprep.subr.mxu0 0.0
    %789 = vmatpush1.msra.mxu0 0.0
    %790 = vmatprep.subr.mxu0 0.0
    %791 = vmatpush1.msra.mxu0 0.0
    %792 = vmatprep.subr.mxu0 0.0
    %793 = vmatpush1.msra.mxu0 0.0
    %794 = vmatprep.subr.mxu0 0.0
    %795 = vmatpush1.msra.mxu0 0.0
    %796 = vmatprep.subr.mxu0 0.0
    %v797 = vand.u32 %v688, 4294901760
    %v798 = vsub.f32 %v688, %v797
    %v799 = vand.u32 %v798, 4294901760
    %v800 = vsub.f32 %v798, %v799
    %v801 = vand.u32 %v800, 4294901760
    %802 = vmatpush1.msra.mxu0 %v801
    %803 = vmatprep.subr.mxu0 0.0
    %804 = vmatpush2.msra.mxu0 0.0
    %805 = vmatprep.subr.mxu0 0.0
    %806 = vmatpush2.msra.mxu0 0.0
    %807 = vmatprep.subr.mxu0 0.0
    %808 = vmatpush2.msra.mxu0 0.0
    %809 = vmatprep.subr.mxu0 0.0
    %810 = vmatpush2.msra.mxu0 0.0
    %811 = vmatprep.subr.mxu0 0.0
    %812 = vmatpush2.msra.mxu0 0.0
    %813 = vmatprep.subr.mxu0 0.0
    %814 = vmatpush2.msra.mxu0 0.0
    %815 = vmatprep.subr.mxu0 0.0
    %816 = vmatpush2.msra.mxu0 0.0
    %817 = vmatprep.subr.mxu0 0.0
    %818 = vmatpush2.msra.mxu0 0.0
    %819 = vmatprep.subr.mxu0 0.0
    %820 = vmatpush2.msra.mxu0 0.0
    %821 = vmatprep.subr.mxu0 0.0
    %822 = vmatpush2.msra.mxu0 0.0
    %823 = vmatprep.subr.mxu0 0.0
    %824 = vmatpush2.msra.mxu0 0.0
    %825 = vmatprep.subr.mxu0 0.0
    %826 = vmatpush2.msra.mxu0 0.0
    %827 = vmatprep.subr.mxu0 0.0
    %828 = vmatpush2.msra.mxu0 0.0
    %829 = vmatprep.subr.mxu0 0.0
    %830 = vmatpush2.msra.mxu0 0.0
    %831 = vmatprep.subr.mxu0 0.0
    %832 = vmatpush2.msra.mxu0 0.0
    %833 = vmatprep.subr.mxu0 0.0
    %834 = vmatpush2.msra.mxu0 0.0
    %835 = vmatprep.mubr.f32.mxu0 0.0
    %v836 = vand.u32 %v684, 4294901760
    %837 = vmatmul.mubr.f32.gmra.mxu0 %v836
    %v838 = vpop.f32.mrf.mxu0
    %v839 = vadd.f32 %v763, %v838
    %v840 = vpop.f32.mrf.mxu0
    %841 = vdwg.mxu0
    %842 = vmatprep.subr.mxu0 0.0
    %843 = vmatpush1.msra.mxu0 0.0
    %844 = vmatprep.subr.mxu0 0.0
    %845 = vmatpush1.msra.mxu0 0.0
    %846 = vmatprep.subr.mxu0 0.0
    %847 = vmatpush1.msra.mxu0 0.0
    %848 = vmatprep.subr.mxu0 0.0
    %849 = vmatpush1.msra.mxu0 0.0
    %850 = vmatprep.subr.mxu0 0.0
    %851 = vmatpush1.msra.mxu0 0.0
    %852 = vmatprep.subr.mxu0 0.0
    %853 = vmatpush1.msra.mxu0 0.0
    %854 = vmatprep.subr.mxu0 0.0
    %855 = vmatpush1.msra.mxu0 0.0
    %856 = vmatprep.subr.mxu0 0.0
    %857 = vmatpush1.msra.mxu0 0.0
    %858 = vmatprep.subr.mxu0 0.0
    %859 = vmatpush1.msra.mxu0 0.0
    %860 = vmatprep.subr.mxu0 0.0
    %861 = vmatpush1.msra.mxu0 0.0
    %862 = vmatprep.subr.mxu0 0.0
    %863 = vmatpush1.msra.mxu0 0.0
    %864 = vmatprep.subr.mxu0 0.0
    %865 = vmatpush1.msra.mxu0 0.0
    %866 = vmatprep.subr.mxu0 0.0
    %867 = vmatpush1.msra.mxu0 0.0
    %868 = vmatprep.subr.mxu0 0.0
    %869 = vmatpush1.msra.mxu0 0.0
    %870 = vmatprep.subr.mxu0 0.0
    %871 = vmatpush1.msra.mxu0 0.0
    %872 = vmatprep.subr.mxu0 0.0
    %v873 = vand.u32 %v688, 4294901760
    %v874 = vsub.f32 %v688, %v873
    %875 = vmatpush1.msra.mxu0 %v874
    %876 = vmatprep.subr.mxu0 0.0
    %877 = vmatpush2.msra.mxu0 0.0
    %878 = vmatprep.subr.mxu0 0.0
    %879 = vmatpush2.msra.mxu0 0.0
    %880 = vmatprep.subr.mxu0 0.0
    %881 = vmatpush2.msra.mxu0 0.0
    %882 = vmatprep.subr.mxu0 0.0
    %883 = vmatpush2.msra.mxu0 0.0
    %884 = vmatprep.subr.mxu0 0.0
    %885 = vmatpush2.msra.mxu0 0.0
    %886 = vmatprep.subr.mxu0 0.0
    %887 = vmatpush2.msra.mxu0 0.0
    %888 = vmatprep.subr.mxu0 0.0
    %889 = vmatpush2.msra.mxu0 0.0
    %890 = vmatprep.subr.mxu0 0.0
    %891 = vmatpush2.msra.mxu0 0.0
    %892 = vmatprep.subr.mxu0 0.0
    %893 = vmatpush2.msra.mxu0 0.0
    %894 = vmatprep.subr.mxu0 0.0
    %895 = vmatpush2.msra.mxu0 0.0
    %896 = vmatprep.subr.mxu0 0.0
    %897 = vmatpush2.msra.mxu0 0.0
    %898 = vmatprep.subr.mxu0 0.0
    %899 = vmatpush2.msra.mxu0 0.0
    %900 = vmatprep.subr.mxu0 0.0
    %901 = vmatpush2.msra.mxu0 0.0
    %902 = vmatprep.subr.mxu0 0.0
    %903 = vmatpush2.msra.mxu0 0.0
    %904 = vmatprep.subr.mxu0 0.0
    %905 = vmatpush2.msra.mxu0 0.0
    %906 = vmatprep.subr.mxu0 0.0
    %907 = vmatpush2.msra.mxu0 0.0
    %908 = vmatprep.mubr.f32.mxu0 0.0
    %v909 = vand.u32 %v684, 4294901760
    %v910 = vsub.f32 %v684, %v909
    %911 = vmatmul.mubr.f32.gmra.mxu0 %v910
    %v912 = vpop.f32.mrf.mxu0
    %v913 = vadd.f32 %v839, %v912
    %v914 = vpop.f32.mrf.mxu0
    %915 = vdwg.mxu0
    %916 = vmatprep.subr.mxu0 0.0
    %917 = vmatpush1.msra.mxu0 0.0
    %918 = vmatprep.subr.mxu0 0.0
    %919 = vmatpush1.msra.mxu0 0.0
    %920 = vmatprep.subr.mxu0 0.0
    %921 = vmatpush1.msra.mxu0 0.0
    %922 = vmatprep.subr.mxu0 0.0
    %923 = vmatpush1.msra.mxu0 0.0
    %924 = vmatprep.subr.mxu0 0.0
    %925 = vmatpush1.msra.mxu0 0.0
    %926 = vmatprep.subr.mxu0 0.0
    %927 = vmatpush1.msra.mxu0 0.0
    %928 = vmatprep.subr.mxu0 0.0
    %929 = vmatpush1.msra.mxu0 0.0
    %930 = vmatprep.subr.mxu0 0.0
    %931 = vmatpush1.msra.mxu0 0.0
    %932 = vmatprep.subr.mxu0 0.0
    %933 = vmatpush1.msra.mxu0 0.0
    %934 = vmatprep.subr.mxu0 0.0
    %935 = vmatpush1.msra.mxu0 0.0
    %936 = vmatprep.subr.mxu0 0.0
    %937 = vmatpush1.msra.mxu0 0.0
    %938 = vmatprep.subr.mxu0 0.0
    %939 = vmatpush1.msra.mxu0 0.0
    %940 = vmatprep.subr.mxu0 0.0
    %941 = vmatpush1.msra.mxu0 0.0
    %942 = vmatprep.subr.mxu0 0.0
    %943 = vmatpush1.msra.mxu0 0.0
    %944 = vmatprep.subr.mxu0 0.0
    %945 = vmatpush1.msra.mxu0 0.0
    %946 = vmatprep.subr.mxu0 0.0
    %v947 = vand.u32 %v688, 4294901760
    %948 = vmatpush1.msra.mxu0 %v947
    %949 = vmatprep.subr.mxu0 0.0
    %950 = vmatpush2.msra.mxu0 0.0
    %951 = vmatprep.subr.mxu0 0.0
    %952 = vmatpush2.msra.mxu0 0.0
    %953 = vmatprep.subr.mxu0 0.0
    %954 = vmatpush2.msra.mxu0 0.0
    %955 = vmatprep.subr.mxu0 0.0
    %956 = vmatpush2.msra.mxu0 0.0
    %957 = vmatprep.subr.mxu0 0.0
    %958 = vmatpush2.msra.mxu0 0.0
    %959 = vmatprep.subr.mxu0 0.0
    %960 = vmatpush2.msra.mxu0 0.0
    %961 = vmatprep.subr.mxu0 0.0
    %962 = vmatpush2.msra.mxu0 0.0
    %963 = vmatprep.subr.mxu0 0.0
    %964 = vmatpush2.msra.mxu0 0.0
    %965 = vmatprep.subr.mxu0 0.0
    %966 = vmatpush2.msra.mxu0 0.0
    %967 = vmatprep.subr.mxu0 0.0
    %968 = vmatpush2.msra.mxu0 0.0
    %969 = vmatprep.subr.mxu0 0.0
    %970 = vmatpush2.msra.mxu0 0.0
    %971 = vmatprep.subr.mxu0 0.0
    %972 = vmatpush2.msra.mxu0 0.0
    %973 = vmatprep.subr.mxu0 0.0
    %974 = vmatpush2.msra.mxu0 0.0
    %975 = vmatprep.subr.mxu0 0.0
    %976 = vmatpush2.msra.mxu0 0.0
    %977 = vmatprep.subr.mxu0 0.0
    %978 = vmatpush2.msra.mxu0 0.0
    %979 = vmatprep.subr.mxu0 0.0
    %980 = vmatpush2.msra.mxu0 0.0
    %981 = vmatprep.mubr.f32.mxu0 0.0
    %v982 = vand.u32 %v684, 4294901760
    %v983 = vsub.f32 %v684, %v982
    %v984 = vand.u32 %v983, 4294901760
    %985 = vmatmul.mubr.f32.gmra.mxu0 %v984
    %v986 = vpop.f32.mrf.mxu0
    %v987 = vadd.f32 %v913, %v986
    %v988 = vpop.f32.mrf.mxu0
    %989 = vdwg.mxu0
    %990 = vmatprep.subr.mxu0 0.0
    %991 = vmatpush1.msra.mxu0 0.0
    %992 = vmatprep.subr.mxu0 0.0
    %993 = vmatpush1.msra.mxu0 0.0
    %994 = vmatprep.subr.mxu0 0.0
    %995 = vmatpush1.msra.mxu0 0.0
    %996 = vmatprep.subr.mxu0 0.0
    %997 = vmatpush1.msra.mxu0 0.0
    %998 = vmatprep.subr.mxu0 0.0
    %999 = vmatpush1.msra.mxu0 0.0
    %1000 = vmatprep.subr.mxu0 0.0
    %1001 = vmatpush1.msra.mxu0 0.0
    %1002 = vmatprep.subr.mxu0 0.0
    %1003 = vmatpush1.msra.mxu0 0.0
    %1004 = vmatprep.subr.mxu0 0.0
    %1005 = vmatpush1.msra.mxu0 0.0
    %1006 = vmatprep.subr.mxu0 0.0
    %1007 = vmatpush1.msra.mxu0 0.0
    %1008 = vmatprep.subr.mxu0 0.0
    %1009 = vmatpush1.msra.mxu0 0.0
    %1010 = vmatprep.subr.mxu0 0.0
    %1011 = vmatpush1.msra.mxu0 0.0
    %1012 = vmatprep.subr.mxu0 0.0
    %1013 = vmatpush1.msra.mxu0 0.0
    %1014 = vmatprep.subr.mxu0 0.0
    %1015 = vmatpush1.msra.mxu0 0.0
    %1016 = vmatprep.subr.mxu0 0.0
    %1017 = vmatpush1.msra.mxu0 0.0
    %1018 = vmatprep.subr.mxu0 0.0
    %1019 = vmatpush1.msra.mxu0 0.0
    %1020 = vmatprep.subr.mxu0 0.0
    %v1021 = vand.u32 %v688, 4294901760
    %v1022 = vsub.f32 %v688, %v1021
    %v1023 = vand.u32 %v1022, 4294901760
    %1024 = vmatpush1.msra.mxu0 %v1023
    %1025 = vmatprep.subr.mxu0 0.0
    %1026 = vmatpush2.msra.mxu0 0.0
    %1027 = vmatprep.subr.mxu0 0.0
    %1028 = vmatpush2.msra.mxu0 0.0
    %1029 = vmatprep.subr.mxu0 0.0
    %1030 = vmatpush2.msra.mxu0 0.0
    %1031 = vmatprep.subr.mxu0 0.0
    %1032 = vmatpush2.msra.mxu0 0.0
    %1033 = vmatprep.subr.mxu0 0.0
    %1034 = vmatpush2.msra.mxu0 0.0
    %1035 = vmatprep.subr.mxu0 0.0
    %1036 = vmatpush2.msra.mxu0 0.0
    %1037 = vmatprep.subr.mxu0 0.0
    %1038 = vmatpush2.msra.mxu0 0.0
    %1039 = vmatprep.subr.mxu0 0.0
    %1040 = vmatpush2.msra.mxu0 0.0
    %1041 = vmatprep.subr.mxu0 0.0
    %1042 = vmatpush2.msra.mxu0 0.0
    %1043 = vmatprep.subr.mxu0 0.0
    %1044 = vmatpush2.msra.mxu0 0.0
    %1045 = vmatprep.subr.mxu0 0.0
    %1046 = vmatpush2.msra.mxu0 0.0
    %1047 = vmatprep.subr.mxu0 0.0
    %1048 = vmatpush2.msra.mxu0 0.0
    %1049 = vmatprep.subr.mxu0 0.0
    %1050 = vmatpush2.msra.mxu0 0.0
    %1051 = vmatprep.subr.mxu0 0.0
    %1052 = vmatpush2.msra.mxu0 0.0
    %1053 = vmatprep.subr.mxu0 0.0
    %1054 = vmatpush2.msra.mxu0 0.0
    %1055 = vmatprep.subr.mxu0 0.0
    %1056 = vmatpush2.msra.mxu0 0.0
    %1057 = vmatprep.mubr.f32.mxu0 0.0
    %v1058 = vand.u32 %v684, 4294901760
    %1059 = vmatmul.mubr.f32.gmra.mxu0 %v1058
    %v1060 = vpop.f32.mrf.mxu0
    %v1061 = vadd.f32 %v987, %v1060
    %v1062 = vpop.f32.mrf.mxu0
    %1063 = vdwg.mxu0
    %1064 = vmatprep.subr.mxu0 0.0
    %1065 = vmatpush1.msra.mxu0 0.0
    %1066 = vmatprep.subr.mxu0 0.0
    %1067 = vmatpush1.msra.mxu0 0.0
    %1068 = vmatprep.subr.mxu0 0.0
    %1069 = vmatpush1.msra.mxu0 0.0
    %1070 = vmatprep.subr.mxu0 0.0
    %1071 = vmatpush1.msra.mxu0 0.0
    %1072 = vmatprep.subr.mxu0 0.0
    %1073 = vmatpush1.msra.mxu0 0.0
    %1074 = vmatprep.subr.mxu0 0.0
    %1075 = vmatpush1.msra.mxu0 0.0
    %1076 = vmatprep.subr.mxu0 0.0
    %1077 = vmatpush1.msra.mxu0 0.0
    %1078 = vmatprep.subr.mxu0 0.0
    %1079 = vmatpush1.msra.mxu0 0.0
    %1080 = vmatprep.subr.mxu0 0.0
    %1081 = vmatpush1.msra.mxu0 0.0
    %1082 = vmatprep.subr.mxu0 0.0
    %1083 = vmatpush1.msra.mxu0 0.0
    %1084 = vmatprep.subr.mxu0 0.0
    %1085 = vmatpush1.msra.mxu0 0.0
    %1086 = vmatprep.subr.mxu0 0.0
    %1087 = vmatpush1.msra.mxu0 0.0
    %1088 = vmatprep.subr.mxu0 0.0
    %1089 = vmatpush1.msra.mxu0 0.0
    %1090 = vmatprep.subr.mxu0 0.0
    %1091 = vmatpush1.msra.mxu0 0.0
    %1092 = vmatprep.subr.mxu0 0.0
    %1093 = vmatpush1.msra.mxu0 0.0
    %1094 = vmatprep.subr.mxu0 0.0
    %v1095 = vand.u32 %v688, 4294901760
    %1096 = vmatpush1.msra.mxu0 %v1095
    %1097 = vmatprep.subr.mxu0 0.0
    %1098 = vmatpush2.msra.mxu0 0.0
    %1099 = vmatprep.subr.mxu0 0.0
    %1100 = vmatpush2.msra.mxu0 0.0
    %1101 = vmatprep.subr.mxu0 0.0
    %1102 = vmatpush2.msra.mxu0 0.0
    %1103 = vmatprep.subr.mxu0 0.0
    %1104 = vmatpush2.msra.mxu0 0.0
    %1105 = vmatprep.subr.mxu0 0.0
    %1106 = vmatpush2.msra.mxu0 0.0
    %1107 = vmatprep.subr.mxu0 0.0
    %1108 = vmatpush2.msra.mxu0 0.0
    %1109 = vmatprep.subr.mxu0 0.0
    %1110 = vmatpush2.msra.mxu0 0.0
    %1111 = vmatprep.subr.mxu0 0.0
    %1112 = vmatpush2.msra.mxu0 0.0
    %1113 = vmatprep.subr.mxu0 0.0
    %1114 = vmatpush2.msra.mxu0 0.0
    %1115 = vmatprep.subr.mxu0 0.0
    %1116 = vmatpush2.msra.mxu0 0.0
    %1117 = vmatprep.subr.mxu0 0.0
    %1118 = vmatpush2.msra.mxu0 0.0
    %1119 = vmatprep.subr.mxu0 0.0
    %1120 = vmatpush2.msra.mxu0 0.0
    %1121 = vmatprep.subr.mxu0 0.0
    %1122 = vmatpush2.msra.mxu0 0.0
    %1123 = vmatprep.subr.mxu0 0.0
    %1124 = vmatpush2.msra.mxu0 0.0
    %1125 = vmatprep.subr.mxu0 0.0
    %1126 = vmatpush2.msra.mxu0 0.0
    %1127 = vmatprep.subr.mxu0 0.0
    %1128 = vmatpush2.msra.mxu0 0.0
    %1129 = vmatprep.mubr.f32.mxu0 0.0
    %v1130 = vand.u32 %v684, 4294901760
    %1131 = vmatmul.mubr.f32.gmra.mxu0 %v1130
    %v1132 = vpop.f32.mrf.mxu0
    %v1133 = vadd.f32 %v1061, %v1132
    %v1134 = vpop.f32.mrf.mxu0
    %1135 = vdwg.mxu0
    %v1136 = vmul.f32 %v18, %v1133
    %v1138 = vlaneseq
    %v1139 = vshrl.u32 %v1138, 7
    %v1140 = vsub.s32 0, %v1139
    %v1141 = vrot.slane %v19, %v1140
    %v1143 = vmul.f32 %v1136, %v1141
    %1144 = vst [vmem:[#allocation2] sm:$0xf] %v1143
    // Predicated region
    $region18: #{tpu_custom_call.1} parent=1 // pred_check
      _
    $region19: #{tpu_custom_call.1} parent=1 // pred_check_branch
      %1146 = sbr.rel (0) target = $region21
    $region20: #{tpu_custom_call.1} parent=1 // pred_region
      %s1148 = ssub.s32 64, 64
      %1149 = vsyncadd [#allocation3], %s1148
      %s1151 = sshll.u32 [#allocation2], 4
      %s1152 = int_to_ptr.vmem [resolvable:$true] %s1151
      %1154 = dma.vmem_to_hbm [thread:$0]  %s1152, 64, %s4, [#allocation3]
    $region21: #{tpu_custom_call.1} parent=1 // pred_fallthru
      _
    // Predicated region
    $region22: #{tpu_custom_call.1} parent=1 // pred_check
      _
    $region23: #{tpu_custom_call.1} parent=1 // pred_check_branch
      %1156 = sbr.rel (0) target = $region25
    $region24: #{tpu_custom_call.1} parent=1 // pred_region
      %1157 = dma.done [#allocation3], 64
    $region25: #{tpu_custom_call.1} parent=1 // pred_fallthru
      _
    %1158 = vsyncpa [#allocation3], 1

</llo_original>
